<compile_context>
chip_gen: v7x
topology: tpu7x:2x2x1
jax: 0.10.0
libtpu: 0.0.40
codegen_flags: <defaults>
</compile_context>

<pallas_src>
import jax
import jax.numpy as jnp
from jax.experimental import pallas as pl
from jax.experimental.pallas import tpu as pltpu

NUM_NEURONS = 8
LANES = 128
MAX_TILE_ROWS = 1024  # 1024*128*4B = 512 KiB/block; double-buffered in+out = 2 MiB
                      # -> comfortably under v7x's 32 MiB scoped-VMEM default.


def _mlp_kernel(w1_ref, b1_ref, w2_ref, b2_ref, x_ref, o_ref):
    # x_ref / o_ref: (tile_rows, 128) VMEM tiles.  w*/b* refs: tiny SMEM arrays.
    x = x_ref[...].astype(jnp.float32)
    # Fold the output bias into the accumulator init (saves one add pass).
    acc = jnp.full(x.shape, b2_ref[0], dtype=jnp.float32)
    # Unrolled hidden layer: 8 neurons -> pure VPU elementwise work (no MXU).
    for j in range(NUM_NEURONS):
        w1 = w1_ref[j]
        b1 = b1_ref[j]
        w2 = w2_ref[j]
        acc = acc + w2 * jnp.maximum(w1 * x + b1, 0.0)
    o_ref[...] = acc.astype(o_ref.dtype)


def distilled_sqrtinv(x, w1, b1, w2, b2):
    """x: (..., 1) float32.  w1: (8,), b1: (8,), w2: (8,), b2: (1,)."""
    orig_shape = x.shape
    assert orig_shape[-1] == 1, "last dim must be the size-1 feature dim"
    flat = x.reshape(-1)
    n = flat.shape[0]

    pad = (-n) % LANES
    if pad:
        # TODO(synk): misaligned sizes take a pad+slice fallback (extra HBM
        # pass); an in-kernel masked tail would avoid it.
        flat = jnp.pad(flat, (0, pad))
    rows = flat.shape[0] // LANES
    x2d = flat.reshape(rows, LANES)

    # Tile the row dimension: full extent for small inputs, 1024-row (8-aligned)
    # tiles otherwise. Pallas masks the ragged last block automatically.
    tile_rows = rows if rows <= MAX_TILE_ROWS else MAX_TILE_ROWS
    grid = (pl.cdiv(rows, tile_rows),)

    out2d = pl.pallas_call(
        _mlp_kernel,
        out_shape=jax.ShapeDtypeStruct((rows, LANES), x.dtype),
        grid=grid,
        in_specs=[
            pl.BlockSpec(memory_space=pltpu.MemorySpace.SMEM),   # w1
            pl.BlockSpec(memory_space=pltpu.MemorySpace.SMEM),   # b1
            pl.BlockSpec(memory_space=pltpu.MemorySpace.SMEM),   # w2
            pl.BlockSpec(memory_space=pltpu.MemorySpace.SMEM),   # b2
            pl.BlockSpec((tile_rows, LANES), lambda i: (i, 0)),  # x tile
        ],
        out_specs=pl.BlockSpec((tile_rows, LANES), lambda i: (i, 0)),
        compiler_params=pltpu.CompilerParams(
            dimension_semantics=("parallel",)),  # shard rows across TCs on v7x
    )(w1, b1, w2, b2, x2d)

    out_flat = out2d.reshape(-1)
    if pad:
        out_flat = out_flat[:n]
    return out_flat.reshape(orig_shape)


def _reference(x, w1, b1, w2, b2):
    # Plain-JAX reference mirroring torch semantics:
    #   h = relu(x @ W1.T + b1);  y = h @ W2.T + b2
    h = jnp.maximum(x * w1[None, :] + b1[None, :], 0.0)   # (N, 8)
    return (h @ w2[:, None]) + b2[None, :]                 # (N, 1)


if __name__ == "__main__":
    key = jax.random.PRNGKey(0)
    kx, k1, k2, k3, k4 = jax.random.split(key, 5)

    # Deterministic synthetic parameters (PyTorch shapes: W1 (8,1), b1 (8,),
    # W2 (1,8), b2 (1,) -> stored flattened here).
    w1 = jax.random.uniform(k1, (NUM_NEURONS,), jnp.float32, -1.0, 1.0)
    b1 = jax.random.uniform(k2, (NUM_NEURONS,), jnp.float32, -1.0, 1.0)
    w2 = jax.random.uniform(k3, (NUM_NEURONS,), jnp.float32, -0.5, 0.5)
    b2 = jax.random.uniform(k4, (1,), jnp.float32, -0.5, 0.5)

    # Primary small input like the torch module: batch of 256 scalars (256, 1),
    # plus a misaligned case and a multi-tile case to exercise all code paths.
    for shape in [(256, 1), (4, 100, 1), (200001, 1)]:
        x = jax.random.uniform(kx, shape, jnp.float32, 0.1, 4.0)
        out = jax.block_until_ready(distilled_sqrtinv(x, w1, b1, w2, b2))
        ref = _reference(x.reshape(-1, 1), w1, b1, w2, b2).reshape(shape)
        assert out.shape == shape
        assert jnp.allclose(out, ref, atol=1e-5, rtol=1e-5), f"mismatch {shape}"

    print("KERNEL_OK")
</pallas_src>

<mosaic_0001>
module attributes {stable_mosaic.version = 11 : i64} {
  func.func @_mlp_kernel(%arg0: i32, %arg1: memref<8xf32, #tpu.memory_space<smem>>, %arg2: memref<8xf32, #tpu.memory_space<smem>>, %arg3: memref<8xf32, #tpu.memory_space<smem>>, %arg4: memref<1xf32, #tpu.memory_space<smem>>, %arg5: memref<2x128xf32, #tpu.memory_space<vmem>>, %arg6: memref<2x128xf32, #tpu.memory_space<vmem>>) attributes {dimension_semantics = [#tpu.dimension_semantics<parallel>], iteration_bounds = array<i64: 1>, scalar_prefetch = 0 : i64, scratch_operands = 0 : i64, tpu.core_type = #tpu.core_type<tc>, window_params = [{transform_indices = @transform_0, window_bounds = array<i64: 8>}, {transform_indices = @transform_1, window_bounds = array<i64: 8>}, {transform_indices = @transform_2, window_bounds = array<i64: 8>}, {transform_indices = @transform_3, window_bounds = array<i64: 1>}, {transform_indices = @transform_4, window_bounds = array<i64: 2, 128>}, {transform_indices = @transform_5, window_bounds = array<i64: 2, 128>}]} {
    %c0 = arith.constant 0 : index
    %c0_0 = arith.constant 0 : index
    %0 = vector.load %arg5[%c0, %c0_0] : memref<2x128xf32, #tpu.memory_space<vmem>>, vector<2x128xf32>
    %c0_1 = arith.constant 0 : index
    %1 = memref.load %arg4[%c0_1] : memref<1xf32, #tpu.memory_space<smem>>
    %2 = vector.broadcast %1 : f32 to vector<2x128xf32>
    %c0_2 = arith.constant 0 : index
    %3 = memref.load %arg1[%c0_2] : memref<8xf32, #tpu.memory_space<smem>>
    %c0_3 = arith.constant 0 : index
    %4 = memref.load %arg2[%c0_3] : memref<8xf32, #tpu.memory_space<smem>>
    %c0_4 = arith.constant 0 : index
    %5 = memref.load %arg3[%c0_4] : memref<8xf32, #tpu.memory_space<smem>>
    %6 = vector.broadcast %3 : f32 to vector<2x128xf32>
    %7 = arith.mulf %6, %0 : vector<2x128xf32>
    %8 = vector.broadcast %4 : f32 to vector<2x128xf32>
    %9 = arith.addf %7, %8 : vector<2x128xf32>
    %cst = arith.constant 0.000000e+00 : f32
    %10 = vector.broadcast %cst : f32 to vector<2x128xf32>
    %11 = arith.maximumf %9, %10 : vector<2x128xf32>
    %12 = vector.broadcast %5 : f32 to vector<2x128xf32>
    %13 = arith.mulf %12, %11 : vector<2x128xf32>
    %14 = arith.addf %2, %13 : vector<2x128xf32>
    %c1 = arith.constant 1 : index
    %15 = memref.load %arg1[%c1] : memref<8xf32, #tpu.memory_space<smem>>
    %c1_5 = arith.constant 1 : index
    %16 = memref.load %arg2[%c1_5] : memref<8xf32, #tpu.memory_space<smem>>
    %c1_6 = arith.constant 1 : index
    %17 = memref.load %arg3[%c1_6] : memref<8xf32, #tpu.memory_space<smem>>
    %18 = vector.broadcast %15 : f32 to vector<2x128xf32>
    %19 = arith.mulf %18, %0 : vector<2x128xf32>
    %20 = vector.broadcast %16 : f32 to vector<2x128xf32>
    %21 = arith.addf %19, %20 : vector<2x128xf32>
    %cst_7 = arith.constant 0.000000e+00 : f32
    %22 = vector.broadcast %cst_7 : f32 to vector<2x128xf32>
    %23 = arith.maximumf %21, %22 : vector<2x128xf32>
    %24 = vector.broadcast %17 : f32 to vector<2x128xf32>
    %25 = arith.mulf %24, %23 : vector<2x128xf32>
    %26 = arith.addf %14, %25 : vector<2x128xf32>
    %c2 = arith.constant 2 : index
    %27 = memref.load %arg1[%c2] : memref<8xf32, #tpu.memory_space<smem>>
    %c2_8 = arith.constant 2 : index
    %28 = memref.load %arg2[%c2_8] : memref<8xf32, #tpu.memory_space<smem>>
    %c2_9 = arith.constant 2 : index
    %29 = memref.load %arg3[%c2_9] : memref<8xf32, #tpu.memory_space<smem>>
    %30 = vector.broadcast %27 : f32 to vector<2x128xf32>
    %31 = arith.mulf %30, %0 : vector<2x128xf32>
    %32 = vector.broadcast %28 : f32 to vector<2x128xf32>
    %33 = arith.addf %31, %32 : vector<2x128xf32>
    %cst_10 = arith.constant 0.000000e+00 : f32
    %34 = vector.broadcast %cst_10 : f32 to vector<2x128xf32>
    %35 = arith.maximumf %33, %34 : vector<2x128xf32>
    %36 = vector.broadcast %29 : f32 to vector<2x128xf32>
    %37 = arith.mulf %36, %35 : vector<2x128xf32>
    %38 = arith.addf %26, %37 : vector<2x128xf32>
    %c3 = arith.constant 3 : index
    %39 = memref.load %arg1[%c3] : memref<8xf32, #tpu.memory_space<smem>>
    %c3_11 = arith.constant 3 : index
    %40 = memref.load %arg2[%c3_11] : memref<8xf32, #tpu.memory_space<smem>>
    %c3_12 = arith.constant 3 : index
    %41 = memref.load %arg3[%c3_12] : memref<8xf32, #tpu.memory_space<smem>>
    %42 = vector.broadcast %39 : f32 to vector<2x128xf32>
    %43 = arith.mulf %42, %0 : vector<2x128xf32>
    %44 = vector.broadcast %40 : f32 to vector<2x128xf32>
    %45 = arith.addf %43, %44 : vector<2x128xf32>
    %cst_13 = arith.constant 0.000000e+00 : f32
    %46 = vector.broadcast %cst_13 : f32 to vector<2x128xf32>
    %47 = arith.maximumf %45, %46 : vector<2x128xf32>
    %48 = vector.broadcast %41 : f32 to vector<2x128xf32>
    %49 = arith.mulf %48, %47 : vector<2x128xf32>
    %50 = arith.addf %38, %49 : vector<2x128xf32>
    %c4 = arith.constant 4 : index
    %51 = memref.load %arg1[%c4] : memref<8xf32, #tpu.memory_space<smem>>
    %c4_14 = arith.constant 4 : index
    %52 = memref.load %arg2[%c4_14] : memref<8xf32, #tpu.memory_space<smem>>
    %c4_15 = arith.constant 4 : index
    %53 = memref.load %arg3[%c4_15] : memref<8xf32, #tpu.memory_space<smem>>
    %54 = vector.broadcast %51 : f32 to vector<2x128xf32>
    %55 = arith.mulf %54, %0 : vector<2x128xf32>
    %56 = vector.broadcast %52 : f32 to vector<2x128xf32>
    %57 = arith.addf %55, %56 : vector<2x128xf32>
    %cst_16 = arith.constant 0.000000e+00 : f32
    %58 = vector.broadcast %cst_16 : f32 to vector<2x128xf32>
    %59 = arith.maximumf %57, %58 : vector<2x128xf32>
    %60 = vector.broadcast %53 : f32 to vector<2x128xf32>
    %61 = arith.mulf %60, %59 : vector<2x128xf32>
    %62 = arith.addf %50, %61 : vector<2x128xf32>
    %c5 = arith.constant 5 : index
    %63 = memref.load %arg1[%c5] : memref<8xf32, #tpu.memory_space<smem>>
    %c5_17 = arith.constant 5 : index
    %64 = memref.load %arg2[%c5_17] : memref<8xf32, #tpu.memory_space<smem>>
    %c5_18 = arith.constant 5 : index
    %65 = memref.load %arg3[%c5_18] : memref<8xf32, #tpu.memory_space<smem>>
    %66 = vector.broadcast %63 : f32 to vector<2x128xf32>
    %67 = arith.mulf %66, %0 : vector<2x128xf32>
    %68 = vector.broadcast %64 : f32 to vector<2x128xf32>
    %69 = arith.addf %67, %68 : vector<2x128xf32>
    %cst_19 = arith.constant 0.000000e+00 : f32
    %70 = vector.broadcast %cst_19 : f32 to vector<2x128xf32>
    %71 = arith.maximumf %69, %70 : vector<2x128xf32>
    %72 = vector.broadcast %65 : f32 to vector<2x128xf32>
    %73 = arith.mulf %72, %71 : vector<2x128xf32>
    %74 = arith.addf %62, %73 : vector<2x128xf32>
    %c6 = arith.constant 6 : index
    %75 = memref.load %arg1[%c6] : memref<8xf32, #tpu.memory_space<smem>>
    %c6_20 = arith.constant 6 : index
    %76 = memref.load %arg2[%c6_20] : memref<8xf32, #tpu.memory_space<smem>>
    %c6_21 = arith.constant 6 : index
    %77 = memref.load %arg3[%c6_21] : memref<8xf32, #tpu.memory_space<smem>>
    %78 = vector.broadcast %75 : f32 to vector<2x128xf32>
    %79 = arith.mulf %78, %0 : vector<2x128xf32>
    %80 = vector.broadcast %76 : f32 to vector<2x128xf32>
    %81 = arith.addf %79, %80 : vector<2x128xf32>
    %cst_22 = arith.constant 0.000000e+00 : f32
    %82 = vector.broadcast %cst_22 : f32 to vector<2x128xf32>
    %83 = arith.maximumf %81, %82 : vector<2x128xf32>
    %84 = vector.broadcast %77 : f32 to vector<2x128xf32>
    %85 = arith.mulf %84, %83 : vector<2x128xf32>
    %86 = arith.addf %74, %85 : vector<2x128xf32>
    %c7 = arith.constant 7 : index
    %87 = memref.load %arg1[%c7] : memref<8xf32, #tpu.memory_space<smem>>
    %c7_23 = arith.constant 7 : index
    %88 = memref.load %arg2[%c7_23] : memref<8xf32, #tpu.memory_space<smem>>
    %c7_24 = arith.constant 7 : index
    %89 = memref.load %arg3[%c7_24] : memref<8xf32, #tpu.memory_space<smem>>
    %90 = vector.broadcast %87 : f32 to vector<2x128xf32>
    %91 = arith.mulf %90, %0 : vector<2x128xf32>
    %92 = vector.broadcast %88 : f32 to vector<2x128xf32>
    %93 = arith.addf %91, %92 : vector<2x128xf32>
    %cst_25 = arith.constant 0.000000e+00 : f32
    %94 = vector.broadcast %cst_25 : f32 to vector<2x128xf32>
    %95 = arith.maximumf %93, %94 : vector<2x128xf32>
    %96 = vector.broadcast %89 : f32 to vector<2x128xf32>
    %97 = arith.mulf %96, %95 : vector<2x128xf32>
    %98 = arith.addf %86, %97 : vector<2x128xf32>
    %c0_26 = arith.constant 0 : index
    %c0_27 = arith.constant 0 : index
    %99 = vector.load %arg6[%c0_26, %c0_27] : memref<2x128xf32, #tpu.memory_space<vmem>>, vector<2x128xf32>
    tpu.vector_store %arg6[%c0_26, %c0_27], %98 {strides = array<i32>} : memref<2x128xf32, #tpu.memory_space<vmem>>, vector<2x128xf32>,
    return
  }
  func.func @transform_0(%arg0: i32) -> i32 {
    %c0_i32 = arith.constant 0 : i32
    %c0_i32_0 = arith.constant 0 : i32
    return %c0_i32 : i32
  }
  func.func @transform_1(%arg0: i32) -> i32 {
    %c0_i32 = arith.constant 0 : i32
    %c0_i32_0 = arith.constant 0 : i32
    return %c0_i32 : i32
  }
  func.func @transform_2(%arg0: i32) -> i32 {
    %c0_i32 = arith.constant 0 : i32
    %c0_i32_0 = arith.constant 0 : i32
    return %c0_i32 : i32
  }
  func.func @transform_3(%arg0: i32) -> i32 {
    %c0_i32 = arith.constant 0 : i32
    %c0_i32_0 = arith.constant 0 : i32
    return %c0_i32 : i32
  }
  func.func @transform_4(%arg0: i32) -> (i32, i32) {
    %c0_i32 = arith.constant 0 : i32
    %c0_i32_0 = arith.constant 0 : i32
    return %arg0, %c0_i32 : i32, i32
  }
  func.func @transform_5(%arg0: i32) -> (i32, i32) {
    %c0_i32 = arith.constant 0 : i32
    %c0_i32_0 = arith.constant 0 : i32
    return %arg0, %c0_i32 : i32, i32
  }
}

</mosaic_0001>

<llo_original>
// kernel: tpu_custom_call.1
$region0: #{tpu_custom_call.1}
  #allocation0 [shape = 'u32[]', space=smem, size = 0x4, offset = 0x4, fixed_abs, tag = 'smem constant byte address 0x4 - core index']
  #allocation1 [shape = 'u32[144,128]{1,0:T(1,128)}', space=vmem, size = 0x12000, scoped, tag = 'internal scratch']
  #allocation2 [shape = 'f32[1]{0:T(128)S(6)}', space=smem, size = 0x200, scoped, tag = 'scoped memory for tpu_custom_call.1']
  %s0 = inlined_call_operand.vmem [shape: f32[8], index: 0, kind: input, shape index: {}]
  %s1 = inlined_call_operand.vmem [shape: f32[8], index: 1, kind: input, shape index: {}]
  %s2 = inlined_call_operand.vmem [shape: f32[8], index: 2, kind: input, shape index: {}]
  %s3 = inlined_call_operand.<no memory space> [shape: f32[1], index: 3, kind: input, shape index: {}]
  %s4 = inlined_call_operand.vmem [shape: f32[2,128], index: 4, kind: input, shape index: {}]
  %s5 = inlined_call_operand.hbm [shape: f32[2,128], index: 5, kind: output, shape index: {}]
  %s6 = sld [smem:[#allocation0]]
  $region42: #{tpu_custom_call.1} parent=0
    _
  %s8 = ssub.s32 1, %s6
  %s9 = scalar_select 0, %s8, %s6
  %10 = sst [smem:[#allocation2]] %s3
  $region1: #{tpu_custom_call.1} parent=0
    #allocation3 [shape = 'u8[512]{0}', space=smem, size = 0x200, scoped, tag = 'input window, operand 0, single buffered']
    #allocation4 [shape = 's32[1]{0}', space=sflag, size = 0x4, scoped, tag = 'scoped memory for tpu_custom_call.1']
    #allocation5 [shape = 's32[1]{0}', space=sflag, size = 0x4, scoped, tag = 'scoped memory for tpu_custom_call.1']
    #allocation6 [shape = 'u8[512]{0}', space=smem, size = 0x200, scoped, tag = 'input window, operand 1, single buffered']
    #allocation7 [shape = 's32[1]{0}', space=sflag, size = 0x4, scoped, tag = 'scoped memory for tpu_custom_call.1']
    #allocation8 [shape = 'u8[512]{0}', space=smem, size = 0x200, scoped, tag = 'input window, operand 2, single buffered']
    #allocation9 [shape = 'u8[1024]{0}', space=vmem, size = 0x400, scoped, tag = 'output window, operand 0, single buffered']
    %11 = vsyncpa [#allocation5], 0
    %12 = vsyncpa [#allocation7], 0
    %13 = vsyncpa [#allocation4], 0
    // Predicated region
    $region2: #{tpu_custom_call.1} parent=1 // pred_check
      _
    $region3: #{tpu_custom_call.1} parent=1 // pred_check_branch
      %15 = sbr.rel (0) target = $region5
    $region4: #{tpu_custom_call.1} parent=1 // pred_region
      %s17 = ssub.s32 16, 16
      %18 = vsyncadd [#allocation5], %s17
      %s20 = sshll.u32 %s0, 4
      %s21 = int_to_ptr.vmem [resolvable:$true] %s20
      %23 = dma.vmem_to_smem %s21, 16, [#allocation3], [#allocation5]
    $region5: #{tpu_custom_call.1} parent=1 // pred_fallthru
      _
    // Predicated region
    $region6: #{tpu_custom_call.1} parent=1 // pred_check
      _
    $region7: #{tpu_custom_call.1} parent=1 // pred_check_branch
      %25 = sbr.rel (0) target = $region9
    $region8: #{tpu_custom_call.1} parent=1 // pred_region
      %s27 = ssub.s32 16, 16
      %28 = vsyncadd [#allocation7], %s27
      %s30 = sshll.u32 %s1, 4
      %s31 = int_to_ptr.vmem [resolvable:$true] %s30
      %33 = dma.vmem_to_smem %s31, 16, [#allocation6], [#allocation7]
    $region9: #{tpu_custom_call.1} parent=1 // pred_fallthru
      _
    // Predicated region
    $region10: #{tpu_custom_call.1} parent=1 // pred_check
      _
    $region11: #{tpu_custom_call.1} parent=1 // pred_check_branch
      %35 = sbr.rel (0) target = $region13
    $region12: #{tpu_custom_call.1} parent=1 // pred_region
      %s37 = ssub.s32 16, 16
      %38 = vsyncadd [#allocation7], %s37
      %s40 = sshll.u32 %s2, 4
      %s41 = int_to_ptr.vmem [resolvable:$true] %s40
      %43 = dma.vmem_to_smem %s41, 16, [#allocation8], [#allocation7]
    $region13: #{tpu_custom_call.1} parent=1 // pred_fallthru
      _
    // Predicated region
    $region14: #{tpu_custom_call.1} parent=1 // pred_check
      _
    $region15: #{tpu_custom_call.1} parent=1 // pred_check_branch
      %45 = sbr.rel (0) target = $region17
    $region16: #{tpu_custom_call.1} parent=1 // pred_region
      _
    $region17: #{tpu_custom_call.1} parent=1 // pred_fallthru
      _
    // Predicated region
    $region18: #{tpu_custom_call.1} parent=1 // pred_check
      _
    $region19: #{tpu_custom_call.1} parent=1 // pred_check_branch
      %47 = sbr.rel (0) target = $region21
    $region20: #{tpu_custom_call.1} parent=1 // pred_region
      _
    $region21: #{tpu_custom_call.1} parent=1 // pred_fallthru
      _
    // Predicated region
    $region22: #{tpu_custom_call.1} parent=1 // pred_check
      _
    $region23: #{tpu_custom_call.1} parent=1 // pred_check_branch
      %49 = sbr.rel (0) target = $region25
    $region24: #{tpu_custom_call.1} parent=1 // pred_region
      %50 = dma.done [#allocation5], 16
    $region25: #{tpu_custom_call.1} parent=1 // pred_fallthru
      _
    // Predicated region
    $region26: #{tpu_custom_call.1} parent=1 // pred_check
      _
    $region27: #{tpu_custom_call.1} parent=1 // pred_check_branch
      %52 = sbr.rel (0) target = $region29
    $region28: #{tpu_custom_call.1} parent=1 // pred_region
      %53 = dma.done [#allocation7], 16
    $region29: #{tpu_custom_call.1} parent=1 // pred_fallthru
      _
    // Predicated region
    $region30: #{tpu_custom_call.1} parent=1 // pred_check
      _
    $region31: #{tpu_custom_call.1} parent=1 // pred_check_branch
      %55 = sbr.rel (0) target = $region33
    $region32: #{tpu_custom_call.1} parent=1 // pred_region
      %56 = dma.done [#allocation7], 16
    $region33: #{tpu_custom_call.1} parent=1 // pred_fallthru
      _
    %57 = sfence
    %v58 = vld [vmem:[%s4] sm:$0x3]
    %s59 = sld [smem:[#allocation2]]
    %v60 = vstv %s59
    %s61 = sld [smem:[#allocation3]]
    %s62 = sld [smem:[#allocation6]]
    %s63 = sld [smem:[#allocation8]]
    %v64 = vstv %s61
    %v65 = vmul.f32 %v64, %v58
    %v66 = vstv %s62
    %v67 = vadd.f32 %v65, %v66
    %v68 = vmax.f32 %v67, 0.0
    %v69 = vstv %s63
    %v70 = vmul.f32 %v69, %v68
    %v71 = vadd.f32 %v60, %v70
    %s72 = sld [smem:[#allocation3 + $0x1]]
    %s73 = sld [smem:[#allocation6 + $0x1]]
    %s74 = sld [smem:[#allocation8 + $0x1]]
    %v75 = vstv %s72
    %v76 = vmul.f32 %v75, %v58
    %v77 = vstv %s73
    %v78 = vadd.f32 %v76, %v77
    %v79 = vmax.f32 %v78, 0.0
    %v80 = vstv %s74
    %v81 = vmul.f32 %v80, %v79
    %v82 = vadd.f32 %v71, %v81
    %s83 = sld [smem:[#allocation3 + $0x2]]
    %s84 = sld [smem:[#allocation6 + $0x2]]
    %s85 = sld [smem:[#allocation8 + $0x2]]
    %v86 = vstv %s83
    %v87 = vmul.f32 %v86, %v58
    %v88 = vstv %s84
    %v89 = vadd.f32 %v87, %v88
    %v90 = vmax.f32 %v89, 0.0
    %v91 = vstv %s85
    %v92 = vmul.f32 %v91, %v90
    %v93 = vadd.f32 %v82, %v92
    %s94 = sld [smem:[#allocation3 + $0x3]]
    %s95 = sld [smem:[#allocation6 + $0x3]]
    %s96 = sld [smem:[#allocation8 + $0x3]]
    %v97 = vstv %s94
    %v98 = vmul.f32 %v97, %v58
    %v99 = vstv %s95
    %v100 = vadd.f32 %v98, %v99
    %v101 = vmax.f32 %v100, 0.0
    %v102 = vstv %s96
    %v103 = vmul.f32 %v102, %v101
    %v104 = vadd.f32 %v93, %v103
    %s105 = sld [smem:[#allocation3 + $0x4]]
    %s106 = sld [smem:[#allocation6 + $0x4]]
    %s107 = sld [smem:[#allocation8 + $0x4]]
    %v108 = vstv %s105
    %v109 = vmul.f32 %v108, %v58
    %v110 = vstv %s106
    %v111 = vadd.f32 %v109, %v110
    %v112 = vmax.f32 %v111, 0.0
    %v113 = vstv %s107
    %v114 = vmul.f32 %v113, %v112
    %v115 = vadd.f32 %v104, %v114
    %s116 = sld [smem:[#allocation3 + $0x5]]
    %s117 = sld [smem:[#allocation6 + $0x5]]
    %s118 = sld [smem:[#allocation8 + $0x5]]
    %v119 = vstv %s116
    %v120 = vmul.f32 %v119, %v58
    %v121 = vstv %s117
    %v122 = vadd.f32 %v120, %v121
    %v123 = vmax.f32 %v122, 0.0
    %v124 = vstv %s118
    %v125 = vmul.f32 %v124, %v123
    %v126 = vadd.f32 %v115, %v125
    %s127 = sld [smem:[#allocation3 + $0x6]]
    %s128 = sld [smem:[#allocation6 + $0x6]]
    %s129 = sld [smem:[#allocation8 + $0x6]]
    %v130 = vstv %s127
    %v131 = vmul.f32 %v130, %v58
    %v132 = vstv %s128
    %v133 = vadd.f32 %v131, %v132
    %v134 = vmax.f32 %v133, 0.0
    %v135 = vstv %s129
    %v136 = vmul.f32 %v135, %v134
    %v137 = vadd.f32 %v126, %v136
    %s138 = sld [smem:[#allocation3 + $0x7]]
    %s139 = sld [smem:[#allocation6 + $0x7]]
    %s140 = sld [smem:[#allocation8 + $0x7]]
    %v141 = vstv %s138
    %v142 = vmul.f32 %v141, %v58
    %v143 = vstv %s139
    %v144 = vadd.f32 %v142, %v143
    %v145 = vmax.f32 %v144, 0.0
    %v146 = vstv %s140
    %v147 = vmul.f32 %v146, %v145
    %v148 = vadd.f32 %v137, %v147
    %149 = vst [vmem:[#allocation9] sm:$0x3] %v148
    // Predicated region
    $region34: #{tpu_custom_call.1} parent=1 // pred_check
      _
    $region35: #{tpu_custom_call.1} parent=1 // pred_check_branch
      %151 = sbr.rel (0) target = $region37
    $region36: #{tpu_custom_call.1} parent=1 // pred_region
      %s153 = ssub.s32 32, 32
      %154 = vsyncadd [#allocation4], %s153
      %s156 = sshll.u32 [#allocation9], 4
      %s157 = int_to_ptr.vmem [resolvable:$true] %s156
      %159 = dma.vmem_to_hbm [thread:$0]  %s157, 32, %s5, [#allocation4]
    $region37: #{tpu_custom_call.1} parent=1 // pred_fallthru
      _
    // Predicated region
    $region38: #{tpu_custom_call.1} parent=1 // pred_check
      _
    $region39: #{tpu_custom_call.1} parent=1 // pred_check_branch
      %161 = sbr.rel (0) target = $region41
    $region40: #{tpu_custom_call.1} parent=1 // pred_region
      %162 = dma.done [#allocation4], 32
    $region41: #{tpu_custom_call.1} parent=1 // pred_fallthru
      _
    %163 = vsyncpa [#allocation4], 1
    %164 = vsyncpa [#allocation5], 1
    %165 = vsyncpa [#allocation7], 1

</llo_original>
